<compile_context>
chip_gen: v5e
topology: v5e:2x2
jax: 0.10.0
libtpu: 0.0.40
codegen_flags: <defaults>
</compile_context>

<pallas_src>
import functools

import jax
import jax.numpy as jnp
from jax.experimental import pallas as pl
from jax.experimental.pallas import tpu as pltpu


def _small_basic_block_kernel(x_ref, w1_ref, b1_ref, w2_ref, b2_ref,
                              w3_ref, b3_ref, w45_ref, b45_ref, o_ref,
                              *, H, W):
    # x_ref  : (C_in, L)        bf16, L = nb*H*W  (batch folded onto lanes)
    # w1_ref : (Cq, C_in)       bf16  conv1 1x1 (BN1 folded)
    # w2_ref : (Cq, 3*Cq)       bf16  conv2 (3,1) taps [up | center | down]
    # w3_ref : (Cq, 3*Cq)       bf16  conv3 (1,3) taps [left | center | right]
    # w45_ref: (C_out, Cq+C_in) bf16  fused [conv4 1x1 | skip 1x1]
    # b*_ref : (C, 1)           f32   column biases (broadcast over lanes)
    # o_ref  : (C_out, L)
    f32 = jnp.float32
    bf16 = jnp.bfloat16
    HW = H * W
    L = x_ref.shape[1]

    x = x_ref[...]                                             # (C_in, L) bf16

    # Boundary masks, computed once per grid step. Shifts below are circular
    # rolls over the whole lane axis, so lanes whose source would cross a row /
    # column / sample boundary are zeroed (the conv is zero-padded there).
    lane = jax.lax.broadcasted_iota(jnp.int32, (1, L), 1)
    pos_hw = lane % HW                  # position inside a sample
    pos_w = lane % W                    # column inside a row
    has_up = pos_hw >= W                # row h-1 exists inside the sample
    has_dn = pos_hw < (HW - W)          # row h+1 exists inside the sample
    has_lf = pos_w > 0                  # col w-1 exists inside the row
    has_rt = pos_w < (W - 1)            # col w+1 exists inside the row

    def mm(w_ref, v):
        return jnp.dot(w_ref[...], v, preferred_element_type=f32)

    # conv1 1x1 (+ folded BN1) + ReLU.
    h1 = jnp.maximum(mm(w1_ref, x) + b1_ref[...], 0.0)        # (Cq, L) f32

    # conv2 (3,1), pad (1,0): a row shift is a lane shift of W. The 3 taps are
    # fused into one matmul against [up ; center ; down] stacked on the
    # contraction (sublane) axis; pltpu.roll runs on the XLU (near-free).
    up = jnp.where(has_up, pltpu.roll(h1, shift=W, axis=1), 0.0)
    dn = jnp.where(has_dn, pltpu.roll(h1, shift=L - W, axis=1), 0.0)
    s2 = jnp.concatenate([up, h1, dn], axis=0).astype(bf16)   # (3Cq, L)
    h2 = jnp.maximum(mm(w2_ref, s2) + b2_ref[...], 0.0)       # (Cq, L) f32

    # conv3 (1,3), pad (0,1): column shift of one lane, taps fused likewise.
    lf = jnp.where(has_lf, pltpu.roll(h2, shift=1, axis=1), 0.0)
    rt = jnp.where(has_rt, pltpu.roll(h2, shift=L - 1, axis=1), 0.0)
    s3 = jnp.concatenate([lf, h2, rt], axis=0).astype(bf16)   # (3Cq, L)
    h3 = jnp.maximum(mm(w3_ref, s3) + b3_ref[...], 0.0)       # (Cq, L) f32

    # conv4 1x1 + residual 1x1 conv fused: [w4 | w5] @ [h3 ; x] + (b4 + b5).
    s4 = jnp.concatenate([h3.astype(bf16), x], axis=0)        # (Cq+C_in, L)
    out = mm(w45_ref, s4) + b45_ref[...]                      # (C_out, L) f32
    o_ref[...] = out.astype(o_ref.dtype)


def _fold_bn(w, b, bn, eps):
    """Fold inference-mode BatchNorm into conv weight (OIHW) and bias."""
    gamma, beta, mean, var = bn
    s = gamma / jnp.sqrt(var + eps)
    return w * s[:, None, None, None], (b - mean) * s + beta


def _vmem_capacity_bytes():
    try:
        cap = getattr(pltpu.get_tpu_info(), "vmem_capacity_bytes", None)
        if cap:
            return int(cap)
    except Exception:
        pass
    return 64 * 1024 * 1024   # conservative default (v7x per-TC VMEM)


def _pick_batch_block(n, hw, per_sample_bytes, budget):
    """Largest nb with: nb | n, nb*hw lane-aligned, block bytes <= budget,
    and at least 2 grid steps (so both v7x TensorCores get work)."""
    cap = max(1, int(budget // max(int(per_sample_bytes), 1)))
    if n > 1:
        cap = min(cap, n // 2)
    for nb in range(min(cap, n), 0, -1):
        if n % nb == 0 and (nb * hw) % 128 == 0:
            return nb
    return n   # single full-array block (always a legal BlockSpec)


def small_basic_block(x, params, eps=1e-5):
    """x: (N, Cin, H, W) NCHW. params: raw PyTorch-layout weights + BN stats."""
    N, c_in, H, W = x.shape
    HW = H * W
    f32, bf16 = jnp.float32, jnp.bfloat16

    w1, b1 = _fold_bn(params["conv1_w"], params["conv1_b"], params["bn1"], eps)
    w2, b2 = _fold_bn(params["conv2_w"], params["conv2_b"], params["bn2"], eps)
    w3, b3 = _fold_bn(params["conv3_w"], params["conv3_b"], params["bn3"], eps)
    w4, b4 = params["conv4_w"], params["conv4_b"]
    w5, b5 = params["conv5_w"], params["conv5_b"]

    cq = w1.shape[0]
    c_out = w4.shape[0]
    cq_p = max(8, -(-cq // 8) * 8)          # 8-align hidden channels (sublanes)

    def pad_rows(m, rows):
        return jnp.pad(m, ((0, rows - m.shape[0]), (0, 0)))

    def pad_cols(m, cols):
        return jnp.pad(m, ((0, 0), (0, cols - m.shape[1])))

    # conv1 1x1 -> (Cq_p, Cin); padded rows are zero so padded h1 channels = 0.
    w1k = pad_rows(w1[:, :, 0, 0].astype(f32), cq_p)
    b1k = pad_rows(b1.astype(f32)[:, None], cq_p)

    # conv2 (3,1): tap kh=0/1/2 pairs with rows h-1/h/h+1 -> [up|center|down].
    t2 = [pad_cols(pad_rows(w2[:, :, kh, 0].astype(f32), cq_p), cq_p)
          for kh in range(3)]
    w2k = jnp.concatenate(t2, axis=1)                          # (Cq_p, 3*Cq_p)
    b2k = pad_rows(b2.astype(f32)[:, None], cq_p)

    # conv3 (1,3): tap kw=0/1/2 pairs with cols w-1/w/w+1 -> [left|center|right].
    t3 = [pad_cols(pad_rows(w3[:, :, 0, kw].astype(f32), cq_p), cq_p)
          for kw in range(3)]
    w3k = jnp.concatenate(t3, axis=1)                          # (Cq_p, 3*Cq_p)
    b3k = pad_rows(b3.astype(f32)[:, None], cq_p)

    # conv4 + skip fused: [w4 | w5] @ [h3 ; x], bias = b4 + b5.
    w45k = jnp.concatenate(
        [pad_cols(w4[:, :, 0, 0].astype(f32), cq_p),
         w5[:, :, 0, 0].astype(f32)], axis=1)                  # (C_out, Cq_p+Cin)
    b45k = (b4 + b5).astype(f32)[:, None]

    w1k, w2k, w3k, w45k = (w.astype(bf16) for w in (w1k, w2k, w3k, w45k))

    # Channels-major, batch folded onto the lane axis; bf16 storage halves the
    # HBM read of this bandwidth-bound kernel.  (In a real network the caller
    # would hand us this layout/dtype directly — this is layout plumbing.)
    x2 = jnp.transpose(x, (1, 0, 2, 3)).reshape(c_in, N * HW).astype(bf16)

    # Generation-aware block sizing: double-buffered in/out blocks plus the
    # in-kernel f32 intermediates, kept well inside scoped VMEM.
    per_sample = HW * (2 * (c_in * 2 + c_out * 4)              # pipelined I/O
                       + 4 * (c_in + 8 * cq_p + c_out))        # f32 intermediates
    vmem_cap = _vmem_capacity_bytes()
    vmem_limit = min(vmem_cap * 3 // 4, 96 * 1024 * 1024)
    nb = _pick_batch_block(N, HW, per_sample, vmem_limit // 2)
    L = nb * HW

    kernel = functools.partial(_small_basic_block_kernel, H=H, W=W)
    out = pl.pallas_call(
        kernel,
        out_shape=jax.ShapeDtypeStruct((c_out, N * HW), f32),
        grid=(N // nb,),
        in_specs=[
            pl.BlockSpec((c_in, L), lambda g: (0, g)),         # x (streamed)
            pl.BlockSpec(w1k.shape, lambda g: (0, 0)),         # conv1 w
            pl.BlockSpec(b1k.shape, lambda g: (0, 0)),         # conv1 b
            pl.BlockSpec(w2k.shape, lambda g: (0, 0)),         # conv2 taps
            pl.BlockSpec(b2k.shape, lambda g: (0, 0)),         # conv2 b
            pl.BlockSpec(w3k.shape, lambda g: (0, 0)),         # conv3 taps
            pl.BlockSpec(b3k.shape, lambda g: (0, 0)),         # conv3 b
            pl.BlockSpec(w45k.shape, lambda g: (0, 0)),        # conv4|skip w
            pl.BlockSpec(b45k.shape, lambda g: (0, 0)),        # conv4+skip b
        ],
        out_specs=pl.BlockSpec((c_out, L), lambda g: (0, g)),
        compiler_params=pltpu.CompilerParams(
            dimension_semantics=("parallel",),
            vmem_limit_bytes=int(vmem_limit)),
    )(x2, w1k, b1k, w2k, b2k, w3k, b3k, w45k, b45k)

    out = out.reshape(c_out, N, H, W).transpose(1, 0, 2, 3)
    return out.astype(x.dtype)


def small_basic_block_ref(x, params, eps=1e-5):
    """Pure-JAX reference mirroring the PyTorch forward (inference-mode BN)."""
    def conv(v, w, b, pad):
        y = jax.lax.conv_general_dilated(
            v, w, window_strides=(1, 1), padding=pad,
            dimension_numbers=("NCHW", "OIHW", "NCHW"),
            precision=jax.lax.Precision.HIGHEST)
        return y + b[None, :, None, None]

    def bn(v, p):
        gamma, beta, mean, var = p
        inv = gamma / jnp.sqrt(var + eps)
        return ((v - mean[None, :, None, None]) * inv[None, :, None, None]
                + beta[None, :, None, None])

    h = jax.nn.relu(bn(conv(x, params["conv1_w"], params["conv1_b"],
                            [(0, 0), (0, 0)]), params["bn1"]))
    h = jax.nn.relu(bn(conv(h, params["conv2_w"], params["conv2_b"],
                            [(1, 1), (0, 0)]), params["bn2"]))
    h = jax.nn.relu(bn(conv(h, params["conv3_w"], params["conv3_b"],
                            [(0, 0), (1, 1)]), params["bn3"]))
    h = conv(h, params["conv4_w"], params["conv4_b"], [(0, 0), (0, 0)])
    skip = conv(x, params["conv5_w"], params["conv5_b"], [(0, 0), (0, 0)])
    return h + skip


if __name__ == "__main__":
    # ch_out must be divisible by 4 (module uses ch_out // 4 hidden channels).
    N, C_IN, C_OUT, H, W = 2, 8, 16, 16, 16
    CQ = C_OUT // 4

    key = jax.random.PRNGKey(0)
    ks = list(jax.random.split(key, 24))

    def nrm(k, shape, scale=1.0):
        return (scale * jax.random.normal(k, shape)).astype(jnp.float32)

    def bn_params(k, c):
        k1, k2, k3, k4 = jax.random.split(k, 4)
        gamma = (1.0 + 0.1 * jax.random.normal(k1, (c,))).astype(jnp.float32)
        beta = (0.1 * jax.random.normal(k2, (c,))).astype(jnp.float32)
        mean = (0.1 * jax.random.normal(k3, (c,))).astype(jnp.float32)
        var = (1.0 + 0.2 * jnp.abs(jax.random.normal(k4, (c,)))).astype(jnp.float32)
        return (gamma, beta, mean, var)

    params = {
        "conv1_w": nrm(ks[0], (CQ, C_IN, 1, 1), 1.0 / (C_IN ** 0.5)),
        "conv1_b": nrm(ks[1], (CQ,), 0.1),
        "bn1": bn_params(ks[2], CQ),
        "conv2_w": nrm(ks[3], (CQ, CQ, 3, 1), 1.0 / ((3 * CQ) ** 0.5)),
        "conv2_b": nrm(ks[4], (CQ,), 0.1),
        "bn2": bn_params(ks[5], CQ),
        "conv3_w": nrm(ks[6], (CQ, CQ, 1, 3), 1.0 / ((3 * CQ) ** 0.5)),
        "conv3_b": nrm(ks[7], (CQ,), 0.1),
        "bn3": bn_params(ks[8], CQ),
        "conv4_w": nrm(ks[9], (C_OUT, CQ, 1, 1), 1.0 / (CQ ** 0.5)),
        "conv4_b": nrm(ks[10], (C_OUT,), 0.1),
        "conv5_w": nrm(ks[11], (C_OUT, C_IN, 1, 1), 1.0 / (C_IN ** 0.5)),
        "conv5_b": nrm(ks[12], (C_OUT,), 0.1),
    }

    x = nrm(ks[13], (N, C_IN, H, W))

    out = small_basic_block(x, params)
    out = jax.block_until_ready(out)

    ref = small_basic_block_ref(x, params)
    assert out.shape == (N, C_OUT, H, W)
    err = float(jnp.max(jnp.abs(out - ref)))
    # bf16 matmul operands (f32 accumulation) -> loosened tolerance vs pure f32.
    assert jnp.allclose(out, ref, atol=5e-2, rtol=5e-2), f"mismatch: {err}"

    print("KERNEL_OK")
</pallas_src>

<mosaic_0001>
module attributes {stable_mosaic.version = 11 : i64} {
  func.func @_small_basic_block_kernel(%arg0: i32, %arg1: memref<8x256xbf16, #tpu.memory_space<vmem>>, %arg2: memref<8x8xbf16, #tpu.memory_space<vmem>>, %arg3: memref<8x1xf32, #tpu.memory_space<vmem>>, %arg4: memref<8x24xbf16, #tpu.memory_space<vmem>>, %arg5: memref<8x1xf32, #tpu.memory_space<vmem>>, %arg6: memref<8x24xbf16, #tpu.memory_space<vmem>>, %arg7: memref<8x1xf32, #tpu.memory_space<vmem>>, %arg8: memref<16x16xbf16, #tpu.memory_space<vmem>>, %arg9: memref<16x1xf32, #tpu.memory_space<vmem>>, %arg10: memref<16x256xf32, #tpu.memory_space<vmem>>) attributes {dimension_semantics = [#tpu.dimension_semantics<parallel>], iteration_bounds = array<i64: 2>, scalar_prefetch = 0 : i64, scratch_operands = 0 : i64, tpu.core_type = #tpu.core_type<tc>, window_params = [{transform_indices = @transform_0, window_bounds = array<i64: 8, 256>}, {pipeline_mode = #tpu.pipeline_mode<synchronous>, transform_indices = @transform_1, window_bounds = array<i64: 8, 8>}, {pipeline_mode = #tpu.pipeline_mode<synchronous>, transform_indices = @transform_2, window_bounds = array<i64: 8, 1>}, {pipeline_mode = #tpu.pipeline_mode<synchronous>, transform_indices = @transform_3, window_bounds = array<i64: 8, 24>}, {pipeline_mode = #tpu.pipeline_mode<synchronous>, transform_indices = @transform_4, window_bounds = array<i64: 8, 1>}, {pipeline_mode = #tpu.pipeline_mode<synchronous>, transform_indices = @transform_5, window_bounds = array<i64: 8, 24>}, {pipeline_mode = #tpu.pipeline_mode<synchronous>, transform_indices = @transform_6, window_bounds = array<i64: 8, 1>}, {pipeline_mode = #tpu.pipeline_mode<synchronous>, transform_indices = @transform_7, window_bounds = array<i64: 16, 16>}, {pipeline_mode = #tpu.pipeline_mode<synchronous>, transform_indices = @transform_8, window_bounds = array<i64: 16, 1>}, {transform_indices = @transform_9, window_bounds = array<i64: 16, 256>}]} {
    %c0 = arith.constant 0 : index
    %c0_0 = arith.constant 0 : index
    %0 = vector.load %arg1[%c0, %c0_0] : memref<8x256xbf16, #tpu.memory_space<vmem>>, vector<8x256xbf16>
    %1 = tpu.iota {dimensions = array<i32: 1>} : vector<1x256xi32>
    %c256_i32 = arith.constant 256 : i32
    %c0_i32 = arith.constant 0 : i32
    %2 = arith.cmpi eq, %c256_i32, %c0_i32 : i32
    %c1_i32 = arith.constant 1 : i32
    %3 = arith.select %2, %c1_i32, %c256_i32 : i32
    %4 = vector.broadcast %3 : i32 to vector<1x256xi32>
    %5 = arith.remsi %1, %4 : vector<1x256xi32>
    %c0_i32_1 = arith.constant 0 : i32
    %6 = vector.broadcast %c0_i32_1 : i32 to vector<1x256xi32>
    %7 = arith.cmpi ne, %5, %6 : vector<1x256xi32>
    %c0_i32_2 = arith.constant 0 : i32
    %8 = vector.broadcast %c0_i32_2 : i32 to vector<1x256xi32>
    %9 = arith.cmpi slt, %5, %8 : vector<1x256xi32>
    %c0_i32_3 = arith.constant 0 : i32
    %10 = arith.cmpi slt, %3, %c0_i32_3 : i32
    %11 = vector.broadcast %10 : i1 to vector<1x256xi1>
    %12 = vector.broadcast %11 : vector<1x256xi1> to vector<1x256xi1>
    %13 = arith.xori %9, %12 : vector<1x256xi1>
    %14 = arith.andi %13, %7 : vector<1x256xi1>
    %15 = vector.broadcast %3 : i32 to vector<1x256xi32>
    %16 = arith.addi %5, %15 : vector<1x256xi32>
    %17 = arith.select %14, %16, %5 : vector<1x256xi1>, vector<1x256xi32>
    %c16_i32 = arith.constant 16 : i32
    %c0_i32_4 = arith.constant 0 : i32
    %18 = arith.cmpi eq, %c16_i32, %c0_i32_4 : i32
    %c1_i32_5 = arith.constant 1 : i32
    %19 = arith.select %18, %c1_i32_5, %c16_i32 : i32
    %20 = vector.broadcast %19 : i32 to vector<1x256xi32>
    %21 = arith.remsi %1, %20 : vector<1x256xi32>
    %c0_i32_6 = arith.constant 0 : i32
    %22 = vector.broadcast %c0_i32_6 : i32 to vector<1x256xi32>
    %23 = arith.cmpi ne, %21, %22 : vector<1x256xi32>
    %c0_i32_7 = arith.constant 0 : i32
    %24 = vector.broadcast %c0_i32_7 : i32 to vector<1x256xi32>
    %25 = arith.cmpi slt, %21, %24 : vector<1x256xi32>
    %c0_i32_8 = arith.constant 0 : i32
    %26 = arith.cmpi slt, %19, %c0_i32_8 : i32
    %27 = vector.broadcast %26 : i1 to vector<1x256xi1>
    %28 = vector.broadcast %27 : vector<1x256xi1> to vector<1x256xi1>
    %29 = arith.xori %25, %28 : vector<1x256xi1>
    %30 = arith.andi %29, %23 : vector<1x256xi1>
    %31 = vector.broadcast %19 : i32 to vector<1x256xi32>
    %32 = arith.addi %21, %31 : vector<1x256xi32>
    %33 = arith.select %30, %32, %21 : vector<1x256xi1>, vector<1x256xi32>
    %c16_i32_9 = arith.constant 16 : i32
    %34 = vector.broadcast %c16_i32_9 : i32 to vector<1x256xi32>
    %35 = arith.cmpi sge, %17, %34 : vector<1x256xi32>
    %c240_i32 = arith.constant 240 : i32
    %36 = vector.broadcast %c240_i32 : i32 to vector<1x256xi32>
    %37 = arith.cmpi slt, %17, %36 : vector<1x256xi32>
    %c0_i32_10 = arith.constant 0 : i32
    %38 = vector.broadcast %c0_i32_10 : i32 to vector<1x256xi32>
    %39 = arith.cmpi sgt, %33, %38 : vector<1x256xi32>
    %c15_i32 = arith.constant 15 : i32
    %40 = vector.broadcast %c15_i32 : i32 to vector<1x256xi32>
    %41 = arith.cmpi slt, %33, %40 : vector<1x256xi32>
    %c0_11 = arith.constant 0 : index
    %c0_12 = arith.constant 0 : index
    %42 = vector.load %arg2[%c0_11, %c0_12] : memref<8x8xbf16, #tpu.memory_space<vmem>>, vector<8x8xbf16>
    %cst = arith.constant dense<0.000000e+00> : vector<8x256xf32>
    %43 = tpu.matmul %42, %0, %cst {dimension_numbers = #tpu.dot_dimension_numbers<[1], [0], [0], [1], [0, 0, 1, 1], [], []>} : vector<8x8xbf16>, vector<8x256xbf16>, vector<8x256xf32> -> vector<8x256xf32>
    %c0_13 = arith.constant 0 : index
    %c0_14 = arith.constant 0 : index
    %44 = vector.load %arg3[%c0_13, %c0_14] : memref<8x1xf32, #tpu.memory_space<vmem>>, vector<8x1xf32>
    %45 = vector.broadcast %44 : vector<8x1xf32> to vector<8x256xf32>
    %46 = arith.addf %43, %45 : vector<8x256xf32>
    %cst_15 = arith.constant 0.000000e+00 : f32
    %47 = vector.broadcast %cst_15 : f32 to vector<8x256xf32>
    %48 = arith.maximumf %46, %47 : vector<8x256xf32>
    %c16_i32_16 = arith.constant 16 : i32
    %49 = tpu.dynamic_rotate %48 by %c16_i32_16 dim 1 : vector<8x256xf32>, i32 -> vector<8x256xf32>
    %cst_17 = arith.constant 0.000000e+00 : f32
    %50 = vector.shape_cast %35 : vector<1x256xi1> to vector<1x256xi1>
    %51 = vector.broadcast %50 : vector<1x256xi1> to vector<8x256xi1>
    %52 = vector.broadcast %cst_17 : f32 to vector<8x256xf32>
    %53 = arith.select %51, %49, %52 : vector<8x256xi1>, vector<8x256xf32>
    %c240_i32_18 = arith.constant 240 : i32
    %54 = tpu.dynamic_rotate %48 by %c240_i32_18 dim 1 : vector<8x256xf32>, i32 -> vector<8x256xf32>
    %cst_19 = arith.constant 0.000000e+00 : f32
    %55 = vector.shape_cast %37 : vector<1x256xi1> to vector<1x256xi1>
    %56 = vector.broadcast %55 : vector<1x256xi1> to vector<8x256xi1>
    %57 = vector.broadcast %cst_19 : f32 to vector<8x256xf32>
    %58 = arith.select %56, %54, %57 : vector<8x256xi1>, vector<8x256xf32>
    %59 = tpu.concatenate %53, %48, %58 in 0 : vector<8x256xf32>, vector<8x256xf32>, vector<8x256xf32> -> vector<24x256xf32>
    %60 = arith.truncf %59 : vector<24x256xf32> to vector<24x256xbf16>
    %c0_20 = arith.constant 0 : index
    %c0_21 = arith.constant 0 : index
    %61 = vector.load %arg4[%c0_20, %c0_21] : memref<8x24xbf16, #tpu.memory_space<vmem>>, vector<8x24xbf16>
    %cst_22 = arith.constant dense<0.000000e+00> : vector<8x256xf32>
    %62 = tpu.matmul %61, %60, %cst_22 {dimension_numbers = #tpu.dot_dimension_numbers<[1], [0], [0], [1], [0, 0, 1, 1], [], []>} : vector<8x24xbf16>, vector<24x256xbf16>, vector<8x256xf32> -> vector<8x256xf32>
    %c0_23 = arith.constant 0 : index
    %c0_24 = arith.constant 0 : index
    %63 = vector.load %arg5[%c0_23, %c0_24] : memref<8x1xf32, #tpu.memory_space<vmem>>, vector<8x1xf32>
    %64 = vector.broadcast %63 : vector<8x1xf32> to vector<8x256xf32>
    %65 = arith.addf %62, %64 : vector<8x256xf32>
    %cst_25 = arith.constant 0.000000e+00 : f32
    %66 = vector.broadcast %cst_25 : f32 to vector<8x256xf32>
    %67 = arith.maximumf %65, %66 : vector<8x256xf32>
    %c1_i32_26 = arith.constant 1 : i32
    %68 = tpu.dynamic_rotate %67 by %c1_i32_26 dim 1 : vector<8x256xf32>, i32 -> vector<8x256xf32>
    %cst_27 = arith.constant 0.000000e+00 : f32
    %69 = vector.shape_cast %39 : vector<1x256xi1> to vector<1x256xi1>
    %70 = vector.broadcast %69 : vector<1x256xi1> to vector<8x256xi1>
    %71 = vector.broadcast %cst_27 : f32 to vector<8x256xf32>
    %72 = arith.select %70, %68, %71 : vector<8x256xi1>, vector<8x256xf32>
    %c255_i32 = arith.constant 255 : i32
    %73 = tpu.dynamic_rotate %67 by %c255_i32 dim 1 : vector<8x256xf32>, i32 -> vector<8x256xf32>
    %cst_28 = arith.constant 0.000000e+00 : f32
    %74 = vector.shape_cast %41 : vector<1x256xi1> to vector<1x256xi1>
    %75 = vector.broadcast %74 : vector<1x256xi1> to vector<8x256xi1>
    %76 = vector.broadcast %cst_28 : f32 to vector<8x256xf32>
    %77 = arith.select %75, %73, %76 : vector<8x256xi1>, vector<8x256xf32>
    %78 = tpu.concatenate %72, %67, %77 in 0 : vector<8x256xf32>, vector<8x256xf32>, vector<8x256xf32> -> vector<24x256xf32>
    %79 = arith.truncf %78 : vector<24x256xf32> to vector<24x256xbf16>
    %c0_29 = arith.constant 0 : index
    %c0_30 = arith.constant 0 : index
    %80 = vector.load %arg6[%c0_29, %c0_30] : memref<8x24xbf16, #tpu.memory_space<vmem>>, vector<8x24xbf16>
    %cst_31 = arith.constant dense<0.000000e+00> : vector<8x256xf32>
    %81 = tpu.matmul %80, %79, %cst_31 {dimension_numbers = #tpu.dot_dimension_numbers<[1], [0], [0], [1], [0, 0, 1, 1], [], []>} : vector<8x24xbf16>, vector<24x256xbf16>, vector<8x256xf32> -> vector<8x256xf32>
    %c0_32 = arith.constant 0 : index
    %c0_33 = arith.constant 0 : index
    %82 = vector.load %arg7[%c0_32, %c0_33] : memref<8x1xf32, #tpu.memory_space<vmem>>, vector<8x1xf32>
    %83 = vector.broadcast %82 : vector<8x1xf32> to vector<8x256xf32>
    %84 = arith.addf %81, %83 : vector<8x256xf32>
    %cst_34 = arith.constant 0.000000e+00 : f32
    %85 = vector.broadcast %cst_34 : f32 to vector<8x256xf32>
    %86 = arith.maximumf %84, %85 : vector<8x256xf32>
    %87 = arith.truncf %86 : vector<8x256xf32> to vector<8x256xbf16>
    %88 = tpu.concatenate %87, %0 in 0 : vector<8x256xbf16>, vector<8x256xbf16> -> vector<16x256xbf16>
    %c0_35 = arith.constant 0 : index
    %c0_36 = arith.constant 0 : index
    %89 = vector.load %arg8[%c0_35, %c0_36] : memref<16x16xbf16, #tpu.memory_space<vmem>>, vector<16x16xbf16>
    %cst_37 = arith.constant dense<0.000000e+00> : vector<16x256xf32>
    %90 = tpu.matmul %89, %88, %cst_37 {dimension_numbers = #tpu.dot_dimension_numbers<[1], [0], [0], [1], [0, 0, 1, 1], [], []>} : vector<16x16xbf16>, vector<16x256xbf16>, vector<16x256xf32> -> vector<16x256xf32>
    %c0_38 = arith.constant 0 : index
    %c0_39 = arith.constant 0 : index
    %91 = vector.load %arg9[%c0_38, %c0_39] : memref<16x1xf32, #tpu.memory_space<vmem>>, vector<16x1xf32>
    %92 = vector.broadcast %91 : vector<16x1xf32> to vector<16x256xf32>
    %93 = arith.addf %90, %92 : vector<16x256xf32>
    %c0_40 = arith.constant 0 : index
    %c0_41 = arith.constant 0 : index
    %94 = vector.load %arg10[%c0_40, %c0_41] : memref<16x256xf32, #tpu.memory_space<vmem>>, vector<16x256xf32>
    tpu.vector_store %arg10[%c0_40, %c0_41], %93 {strides = array<i32>} : memref<16x256xf32, #tpu.memory_space<vmem>>, vector<16x256xf32>,
    return
  }
  func.func @transform_0(%arg0: i32) -> (i32, i32) {
    %c0_i32 = arith.constant 0 : i32
    %c0_i32_0 = arith.constant 0 : i32
    return %c0_i32, %arg0 : i32, i32
  }
  func.func @transform_1(%arg0: i32) -> (i32, i32) {
    %c0_i32 = arith.constant 0 : i32
    %c0_i32_0 = arith.constant 0 : i32
    %c0_i32_1 = arith.constant 0 : i32
    return %c0_i32, %c0_i32_0 : i32, i32
  }
  func.func @transform_2(%arg0: i32) -> (i32, i32) {
    %c0_i32 = arith.constant 0 : i32
    %c0_i32_0 = arith.constant 0 : i32
    %c0_i32_1 = arith.constant 0 : i32
    return %c0_i32, %c0_i32_0 : i32, i32
  }
  func.func @transform_3(%arg0: i32) -> (i32, i32) {
    %c0_i32 = arith.constant 0 : i32
    %c0_i32_0 = arith.constant 0 : i32
    %c0_i32_1 = arith.constant 0 : i32
    return %c0_i32, %c0_i32_0 : i32, i32
  }
  func.func @transform_4(%arg0: i32) -> (i32, i32) {
    %c0_i32 = arith.constant 0 : i32
    %c0_i32_0 = arith.constant 0 : i32
    %c0_i32_1 = arith.constant 0 : i32
    return %c0_i32, %c0_i32_0 : i32, i32
  }
  func.func @transform_5(%arg0: i32) -> (i32, i32) {
    %c0_i32 = arith.constant 0 : i32
    %c0_i32_0 = arith.constant 0 : i32
    %c0_i32_1 = arith.constant 0 : i32
    return %c0_i32, %c0_i32_0 : i32, i32
  }
  func.func @transform_6(%arg0: i32) -> (i32, i32) {
    %c0_i32 = arith.constant 0 : i32
    %c0_i32_0 = arith.constant 0 : i32
    %c0_i32_1 = arith.constant 0 : i32
    return %c0_i32, %c0_i32_0 : i32, i32
  }
  func.func @transform_7(%arg0: i32) -> (i32, i32) {
    %c0_i32 = arith.constant 0 : i32
    %c0_i32_0 = arith.constant 0 : i32
    %c0_i32_1 = arith.constant 0 : i32
    return %c0_i32, %c0_i32_0 : i32, i32
  }
  func.func @transform_8(%arg0: i32) -> (i32, i32) {
    %c0_i32 = arith.constant 0 : i32
    %c0_i32_0 = arith.constant 0 : i32
    %c0_i32_1 = arith.constant 0 : i32
    return %c0_i32, %c0_i32_0 : i32, i32
  }
  func.func @transform_9(%arg0: i32) -> (i32, i32) {
    %c0_i32 = arith.constant 0 : i32
    %c0_i32_0 = arith.constant 0 : i32
    return %c0_i32, %arg0 : i32, i32
  }
}

</mosaic_0001>

<llo_original>
// kernel: tpu_custom_call.1
$region0: #{tpu_custom_call.1}
  #allocation0 [shape = 'u32[]', space=smem, size = 0x4, offset = 0x4, fixed_abs, tag = 'smem constant byte address 0x4 - core index']
  #allocation1 [shape = 'u32[72,128]{1,0:T(1,128)}', space=vmem, size = 0x9000, scoped, tag = 'internal scratch']
  %s0 = inlined_call_operand.vmem [shape: bf16[8,512], index: 0, kind: input, shape index: {}]
  %s1 = inlined_call_operand.vmem [shape: bf16[8,8], index: 1, kind: input, shape index: {}]
  %s2 = inlined_call_operand.vmem [shape: f32[8,1], index: 2, kind: input, shape index: {}]
  %s3 = inlined_call_operand.vmem [shape: bf16[8,24], index: 3, kind: input, shape index: {}]
  %s4 = inlined_call_operand.vmem [shape: f32[8,1], index: 4, kind: input, shape index: {}]
  %s5 = inlined_call_operand.vmem [shape: bf16[8,24], index: 5, kind: input, shape index: {}]
  %s6 = inlined_call_operand.vmem [shape: f32[8,1], index: 6, kind: input, shape index: {}]
  %s7 = inlined_call_operand.vmem [shape: bf16[16,16], index: 7, kind: input, shape index: {}]
  %s8 = inlined_call_operand.vmem [shape: f32[16,1], index: 8, kind: input, shape index: {}]
  %s9 = inlined_call_operand.hbm [shape: f32[16,512], index: 9, kind: output, shape index: {}]
  %s10 = sld [smem:[#allocation0]]
  $region69: #{tpu_custom_call.1} parent=0
    _
  %s12 = ssub.s32 1, %s10
  %s13 = scalar_select 0, %s12, %s10
  $region1: #{tpu_custom_call.1} parent=0
    #allocation2 [shape = 'u8[32768]{0}', space=vmem, size = 0x8000, scoped, tag = 'output window, operand 0']
    #allocation3 [shape = 's32[2]{0}', space=sflag, size = 0x8, scoped, tag = 'scoped memory for tpu_custom_call.1']
    %14 = vsyncpa [#allocation3], 0
    %s15 = scalar_lea.sflag [#allocation3], 1
    %16 = vsyncpa %s15, 0
    loop: start=0, step=1, limit=4
    $region2: #{tpu_custom_call.1} parent=1 // loop_pre_header
      _
    $region3: #{tpu_custom_call.1} parent=1 // loop_header
      %s18 = sphi 0, %s22
      %p19 = scmp.ge.s32.totalorder %s18, 4
      %s28 = sphi 0, %s30
      %s31 = sphi 0, %s28
      %s32 = sphi 0, %s31
      %s48 = sphi 0, %s32
      %s52 = sphi 0, %s52
      %s54 = sphi 0, %s52
      %s55 = sphi 0, %s54
      %s69 = sphi 0, %s55
      %s73 = sphi 0, %s73
      %s75 = sphi 0, %s73
      %s76 = sphi 0, %s75
      %s90 = sphi 0, %s76
      %s94 = sphi 0, %s94
      %s96 = sphi 0, %s94
      %s97 = sphi 0, %s96
      %s111 = sphi 0, %s97
      %s115 = sphi 0, %s115
      %s117 = sphi 0, %s115
      %s118 = sphi 0, %s117
      %s132 = sphi 0, %s118
      %s136 = sphi 0, %s136
      %s138 = sphi 0, %s136
      %s139 = sphi 0, %s138
      %s153 = sphi 0, %s139
      %s157 = sphi 0, %s157
      %s159 = sphi 0, %s157
      %s160 = sphi 0, %s159
      %s174 = sphi 0, %s160
      %s178 = sphi 0, %s178
      %s180 = sphi 0, %s178
      %s181 = sphi 0, %s180
      %s195 = sphi 0, %s181
      %s199 = sphi 0, %s199
      %s201 = sphi 0, %s199
      %s202 = sphi 0, %s201
      %s216 = sphi 0, %s202
      %s222 = sphi 0, %s224
      %s225 = sphi 0, %s222
      %s226 = sphi 0, %s225
      %s242 = sphi 0, %s226
    $region4: #{tpu_custom_call.1} parent=1 // loop_header_branch
      %21 = sbr.rel (%p19) target = $region8
    $region5: #{tpu_custom_call.1} parent=1 // loop_body
      %s23 = ssub.s32 %s18, 1
      %s24 = ssub.s32 %s18, 2
      %s25 = sadd.s32 %s18, 1
      %s26 = ssub.s32 %s18, %s25
      %p27 = scmp.eq.s32.totalorder %s26, 0
      %s29 = sadd.s32 %s28, 1
      %s30 = scalar_select %p27, %s28, %s29
      %p33 = pneg %p27
      %p34 = scmp.eq.s32.totalorder %s18, 1
      %p35 = por %p33, %p34
      %p36 = scmp.ne.s32.totalorder %s28, %s31
      %p37 = scmp.eq.s32.totalorder %s18, 0
      %p38 = por %p36, %p37
      %p39 = scmp.ne.s32.totalorder %s28, %s31
      %p40 = scmp.eq.s32.totalorder %s23, 1
      %p41 = por %p39, %p40
      %p42 = scmp.ne.s32.totalorder %s31, %s32
      %p43 = scmp.eq.s32.totalorder %s23, 0
      %p44 = por %p42, %p43
      %p45 = scmp.ne.s32.totalorder %s31, %s32
      %p46 = scmp.eq.s32.totalorder %s24, 1
      %p47 = por %p45, %p46
      %p49 = scmp.ne.s32.totalorder %s32, %s48
      %p50 = scmp.eq.s32.totalorder %s24, 0
      %p51 = por %p49, %p50
      %s53 = sadd.s32 %s52, 1
      %p56 = scmp.eq.s32.totalorder %s18, 1
      %p57 = scmp.ne.s32.totalorder %s52, %s54
      %p58 = scmp.eq.s32.totalorder %s18, 0
      %p59 = por %p57, %p58
      %p60 = scmp.ne.s32.totalorder %s52, %s54
      %p61 = scmp.eq.s32.totalorder %s23, 1
      %p62 = por %p60, %p61
      %p63 = scmp.ne.s32.totalorder %s54, %s55
      %p64 = scmp.eq.s32.totalorder %s23, 0
      %p65 = por %p63, %p64
      %p66 = scmp.ne.s32.totalorder %s54, %s55
      %p67 = scmp.eq.s32.totalorder %s24, 1
      %p68 = por %p66, %p67
      %p70 = scmp.ne.s32.totalorder %s55, %s69
      %p71 = scmp.eq.s32.totalorder %s24, 0
      %p72 = por %p70, %p71
      %s74 = sadd.s32 %s73, 1
      %p77 = scmp.eq.s32.totalorder %s18, 1
      %p78 = scmp.ne.s32.totalorder %s73, %s75
      %p79 = scmp.eq.s32.totalorder %s18, 0
      %p80 = por %p78, %p79
      %p81 = scmp.ne.s32.totalorder %s73, %s75
      %p82 = scmp.eq.s32.totalorder %s23, 1
      %p83 = por %p81, %p82
      %p84 = scmp.ne.s32.totalorder %s75, %s76
      %p85 = scmp.eq.s32.totalorder %s23, 0
      %p86 = por %p84, %p85
      %p87 = scmp.ne.s32.totalorder %s75, %s76
      %p88 = scmp.eq.s32.totalorder %s24, 1
      %p89 = por %p87, %p88
      %p91 = scmp.ne.s32.totalorder %s76, %s90
      %p92 = scmp.eq.s32.totalorder %s24, 0
      %p93 = por %p91, %p92
      %s95 = sadd.s32 %s94, 1
      %p98 = scmp.eq.s32.totalorder %s18, 1
      %p99 = scmp.ne.s32.totalorder %s94, %s96
      %p100 = scmp.eq.s32.totalorder %s18, 0
      %p101 = por %p99, %p100
      %p102 = scmp.ne.s32.totalorder %s94, %s96
      %p103 = scmp.eq.s32.totalorder %s23, 1
      %p104 = por %p102, %p103
      %p105 = scmp.ne.s32.totalorder %s96, %s97
      %p106 = scmp.eq.s32.totalorder %s23, 0
      %p107 = por %p105, %p106
      %p108 = scmp.ne.s32.totalorder %s96, %s97
      %p109 = scmp.eq.s32.totalorder %s24, 1
      %p110 = por %p108, %p109
      %p112 = scmp.ne.s32.totalorder %s97, %s111
      %p113 = scmp.eq.s32.totalorder %s24, 0
      %p114 = por %p112, %p113
      %s116 = sadd.s32 %s115, 1
      %p119 = scmp.eq.s32.totalorder %s18, 1
      %p120 = scmp.ne.s32.totalorder %s115, %s117
      %p121 = scmp.eq.s32.totalorder %s18, 0
      %p122 = por %p120, %p121
      %p123 = scmp.ne.s32.totalorder %s115, %s117
      %p124 = scmp.eq.s32.totalorder %s23, 1
      %p125 = por %p123, %p124
      %p126 = scmp.ne.s32.totalorder %s117, %s118
      %p127 = scmp.eq.s32.totalorder %s23, 0
      %p128 = por %p126, %p127
      %p129 = scmp.ne.s32.totalorder %s117, %s118
      %p130 = scmp.eq.s32.totalorder %s24, 1
      %p131 = por %p129, %p130
      %p133 = scmp.ne.s32.totalorder %s118, %s132
      %p134 = scmp.eq.s32.totalorder %s24, 0
      %p135 = por %p133, %p134
      %s137 = sadd.s32 %s136, 1
      %p140 = scmp.eq.s32.totalorder %s18, 1
      %p141 = scmp.ne.s32.totalorder %s136, %s138
      %p142 = scmp.eq.s32.totalorder %s18, 0
      %p143 = por %p141, %p142
      %p144 = scmp.ne.s32.totalorder %s136, %s138
      %p145 = scmp.eq.s32.totalorder %s23, 1
      %p146 = por %p144, %p145
      %p147 = scmp.ne.s32.totalorder %s138, %s139
      %p148 = scmp.eq.s32.totalorder %s23, 0
      %p149 = por %p147, %p148
      %p150 = scmp.ne.s32.totalorder %s138, %s139
      %p151 = scmp.eq.s32.totalorder %s24, 1
      %p152 = por %p150, %p151
      %p154 = scmp.ne.s32.totalorder %s139, %s153
      %p155 = scmp.eq.s32.totalorder %s24, 0
      %p156 = por %p154, %p155
      %s158 = sadd.s32 %s157, 1
      %p161 = scmp.eq.s32.totalorder %s18, 1
      %p162 = scmp.ne.s32.totalorder %s157, %s159
      %p163 = scmp.eq.s32.totalorder %s18, 0
      %p164 = por %p162, %p163
      %p165 = scmp.ne.s32.totalorder %s157, %s159
      %p166 = scmp.eq.s32.totalorder %s23, 1
      %p167 = por %p165, %p166
      %p168 = scmp.ne.s32.totalorder %s159, %s160
      %p169 = scmp.eq.s32.totalorder %s23, 0
      %p170 = por %p168, %p169
      %p171 = scmp.ne.s32.totalorder %s159, %s160
      %p172 = scmp.eq.s32.totalorder %s24, 1
      %p173 = por %p171, %p172
      %p175 = scmp.ne.s32.totalorder %s160, %s174
      %p176 = scmp.eq.s32.totalorder %s24, 0
      %p177 = por %p175, %p176
      %s179 = sadd.s32 %s178, 1
      %p182 = scmp.eq.s32.totalorder %s18, 1
      %p183 = scmp.ne.s32.totalorder %s178, %s180
      %p184 = scmp.eq.s32.totalorder %s18, 0
      %p185 = por %p183, %p184
      %p186 = scmp.ne.s32.totalorder %s178, %s180
      %p187 = scmp.eq.s32.totalorder %s23, 1
      %p188 = por %p186, %p187
      %p189 = scmp.ne.s32.totalorder %s180, %s181
      %p190 = scmp.eq.s32.totalorder %s23, 0
      %p191 = por %p189, %p190
      %p192 = scmp.ne.s32.totalorder %s180, %s181
      %p193 = scmp.eq.s32.totalorder %s24, 1
      %p194 = por %p192, %p193
      %p196 = scmp.ne.s32.totalorder %s181, %s195
      %p197 = scmp.eq.s32.totalorder %s24, 0
      %p198 = por %p196, %p197
      %s200 = sadd.s32 %s199, 1
      %p203 = scmp.eq.s32.totalorder %s18, 1
      %p204 = scmp.ne.s32.totalorder %s199, %s201
      %p205 = scmp.eq.s32.totalorder %s18, 0
      %p206 = por %p204, %p205
      %p207 = scmp.ne.s32.totalorder %s199, %s201
      %p208 = scmp.eq.s32.totalorder %s23, 1
      %p209 = por %p207, %p208
      %p210 = scmp.ne.s32.totalorder %s201, %s202
      %p211 = scmp.eq.s32.totalorder %s23, 0
      %p212 = por %p210, %p211
      %p213 = scmp.ne.s32.totalorder %s201, %s202
      %p214 = scmp.eq.s32.totalorder %s24, 1
      %p215 = por %p213, %p214
      %p217 = scmp.ne.s32.totalorder %s202, %s216
      %p218 = scmp.eq.s32.totalorder %s24, 0
      %p219 = por %p217, %p218
      %s220 = ssub.s32 %s18, %s25
      %p221 = scmp.eq.s32.totalorder %s220, 0
      %s223 = sadd.s32 %s222, 1
      %s224 = scalar_select %p221, %s222, %s223
      %p227 = pneg %p221
      %p228 = scmp.eq.s32.totalorder %s18, 1
      %p229 = por %p227, %p228
      %p230 = scmp.ne.s32.totalorder %s222, %s225
      %p231 = scmp.eq.s32.totalorder %s18, 0
      %p232 = por %p230, %p231
      %p233 = scmp.ne.s32.totalorder %s222, %s225
      %p234 = scmp.eq.s32.totalorder %s23, 1
      %p235 = por %p233, %p234
      %p236 = scmp.ne.s32.totalorder %s225, %s226
      %p237 = scmp.eq.s32.totalorder %s23, 0
      %p238 = por %p236, %p237
      %p239 = scmp.ne.s32.totalorder %s225, %s226
      %p240 = scmp.eq.s32.totalorder %s24, 1
      %p241 = por %p239, %p240
      %p243 = scmp.ne.s32.totalorder %s226, %s242
      %p244 = scmp.eq.s32.totalorder %s24, 0
      %p245 = por %p243, %p244
      %p246 = scmp.le.s32.totalorder 1, %s18
      %p247 = scmp.lt.s32.totalorder %s18, 3
      %p248 = pnand %p246, %p247
      %p249 = pneg %p248
      // Predicated region
      $region9: #{tpu_custom_call.1} parent=5 // pred_check
        _
      $region10: #{tpu_custom_call.1} parent=5 // pred_check_branch
        %251 = sbr.rel (%p248) target = $region12
      $region11: #{tpu_custom_call.1} parent=5 // pred_region
        %s252 = ssub.s32 %s18, 1
        // Predicated region
        $region13: #{tpu_custom_call.1} parent=11 // pred_check
          %p253 = pneg %p65
        $region14: #{tpu_custom_call.1} parent=11 // pred_check_branch
          %255 = sbr.rel (%p253) target = $region16
        $region15: #{tpu_custom_call.1} parent=11 // pred_region
          _
        $region16: #{tpu_custom_call.1} parent=11 // pred_fallthru
          _
        // Predicated region
        $region17: #{tpu_custom_call.1} parent=11 // pred_check
          %p256 = pneg %p86
        $region18: #{tpu_custom_call.1} parent=11 // pred_check_branch
          %258 = sbr.rel (%p256) target = $region20
        $region19: #{tpu_custom_call.1} parent=11 // pred_region
          _
        $region20: #{tpu_custom_call.1} parent=11 // pred_fallthru
          _
        // Predicated region
        $region21: #{tpu_custom_call.1} parent=11 // pred_check
          %p259 = pneg %p107
        $region22: #{tpu_custom_call.1} parent=11 // pred_check_branch
          %261 = sbr.rel (%p259) target = $region24
        $region23: #{tpu_custom_call.1} parent=11 // pred_region
          _
        $region24: #{tpu_custom_call.1} parent=11 // pred_fallthru
          _
        // Predicated region
        $region25: #{tpu_custom_call.1} parent=11 // pred_check
          %p262 = pneg %p128
        $region26: #{tpu_custom_call.1} parent=11 // pred_check_branch
          %264 = sbr.rel (%p262) target = $region28
        $region27: #{tpu_custom_call.1} parent=11 // pred_region
          _
        $region28: #{tpu_custom_call.1} parent=11 // pred_fallthru
          _
        // Predicated region
        $region29: #{tpu_custom_call.1} parent=11 // pred_check
          %p265 = pneg %p149
        $region30: #{tpu_custom_call.1} parent=11 // pred_check_branch
          %267 = sbr.rel (%p265) target = $region32
        $region31: #{tpu_custom_call.1} parent=11 // pred_region
          _
        $region32: #{tpu_custom_call.1} parent=11 // pred_fallthru
          _
        // Predicated region
        $region33: #{tpu_custom_call.1} parent=11 // pred_check
          %p268 = pneg %p170
        $region34: #{tpu_custom_call.1} parent=11 // pred_check_branch
          %270 = sbr.rel (%p268) target = $region36
        $region35: #{tpu_custom_call.1} parent=11 // pred_region
          _
        $region36: #{tpu_custom_call.1} parent=11 // pred_fallthru
          _
        // Predicated region
        $region37: #{tpu_custom_call.1} parent=11 // pred_check
          %p271 = pneg %p191
        $region38: #{tpu_custom_call.1} parent=11 // pred_check_branch
          %273 = sbr.rel (%p271) target = $region40
        $region39: #{tpu_custom_call.1} parent=11 // pred_region
          _
        $region40: #{tpu_custom_call.1} parent=11 // pred_fallthru
          _
        // Predicated region
        $region41: #{tpu_custom_call.1} parent=11 // pred_check
          %p274 = pneg %p212
        $region42: #{tpu_custom_call.1} parent=11 // pred_check_branch
          %276 = sbr.rel (%p274) target = $region44
        $region43: #{tpu_custom_call.1} parent=11 // pred_region
          _
        $region44: #{tpu_custom_call.1} parent=11 // pred_fallthru
          _
      $region12: #{tpu_custom_call.1} parent=5 // pred_fallthru
        _
      %p277 = scmp.lt.s32.totalorder %s18, 2
      // Predicated region
      $region45: #{tpu_custom_call.1} parent=5 // pred_check
        %p278 = pneg %p277
      $region46: #{tpu_custom_call.1} parent=5 // pred_check_branch
        %280 = sbr.rel (%p278) target = $region48
      $region47: #{tpu_custom_call.1} parent=5 // pred_region
        // Predicated region
        $region49: #{tpu_custom_call.1} parent=47 // pred_check
          %p281 = pneg %p38
        $region50: #{tpu_custom_call.1} parent=47 // pred_check_branch
          %283 = sbr.rel (%p281) target = $region52
        $region51: #{tpu_custom_call.1} parent=47 // pred_region
          %s284 = smul.u32 2, %s18
          %p285 = scmp.lt.s32.totalorder %s284, 3
          %s286 = scalar_select %p285, %s284, 3
          %s287 = smul.addr %s286, 4
          %s288 = scalar_lea.vmem %s0, %s287
          %s289 = smul.u32 2, %s18
        $region52: #{tpu_custom_call.1} parent=47 // pred_fallthru
          _
      $region48: #{tpu_custom_call.1} parent=5 // pred_fallthru
        _
      %p290 = scmp.le.s32.totalorder 1, %s18
      %p291 = scmp.lt.s32.totalorder %s18, 3
      %p292 = pnand %p290, %p291
      %p293 = pneg %p292
      // Predicated region
      $region53: #{tpu_custom_call.1} parent=5 // pred_check
        _
      $region54: #{tpu_custom_call.1} parent=5 // pred_check_branch
        %295 = sbr.rel (%p292) target = $region56
      $region55: #{tpu_custom_call.1} parent=5 // pred_region
        %s296 = ssub.s32 %s18, 1
        %s297 = smul.u32 2, %s23
        %p298 = scmp.lt.s32.totalorder %s297, 3
        %s299 = scalar_select %p298, %s297, 3
        %s300 = smul.addr %s299, 4
        %s301 = scalar_lea.vmem %s0, %s300
        %p302 = pneg %p44
        %p303 = pneg %p41
        %p304 = pneg %p65
        %p305 = pneg %p62
        %p306 = pneg %p86
        %p307 = pneg %p83
        %p308 = pneg %p107
        %p309 = pneg %p104
        %p310 = pneg %p128
        %p311 = pneg %p125
        %p312 = pneg %p149
        %p313 = pneg %p146
        %p314 = pneg %p170
        %p315 = pneg %p167
        %p316 = pneg %p191
        %p317 = pneg %p188
        %p318 = pneg %p212
        %p319 = pneg %p209
        %p320 = pneg %p238
        %p321 = pneg %p235
        %s322 = sand.u32 %s225, 1
        %s323 = scalar_lea.sflag [#allocation3], %s322
        %s324 = sand.u32 %s225, 1
        %s325 = smul.addr %s324, 32
        %s326 = scalar_lea.vmem [#allocation2], %s325
        %s327 = smul.u32 2, %s23
        %p328 = scmp.lt.s32.totalorder %s327, 3
        %s329 = scalar_select %p328, %s327, 3
        %s330 = smul.addr %s329, 4
        %s331 = scalar_lea.vmem %s0, %s330
        %s332 = smul.u32 2, %s23
        %s333 = smul.u32 2, %s23
        %v335 = vld [vmem:[%s331] sm:$0xff]
        %v336 = vlaneseq
        %v337 = vand.u32 %v336, 127
        %v338 = vadd.s32 %v337, 128
        %vm339 = vcmp.lt.s32.totalorder %v337, 0
        %v340 = vsub.s32 0, %v337
        %v341 = vsel %vm339, %v340, %v337
        %v342 = vshrl.u32 %v341, 8
        %v343 = vand.u32 %v341, 255
        %v344 = vsub.s32 0, %v343
        %v345 = vsel %vm339, %v344, %v343
        %vm346 = vcmp.lt.s32.totalorder %v338, 0
        %v347 = vsub.s32 0, %v338
        %v348 = vsel %vm346, %v347, %v338
        %v349 = vshrl.u32 %v348, 8
        %v350 = vand.u32 %v348, 255
        %v351 = vsub.s32 0, %v350
        %v352 = vsel %vm346, %v351, %v350
        %vm353 = vcmp.ne.s32.totalorder %v345, 0
        %vm354 = vcmp.ne.s32.totalorder %v352, 0
        %vm355 = vcmp.lt.s32.totalorder %v345, 0
        %vm356 = vcmp.lt.s32.totalorder %v352, 0
        %vm357 = vmand %vm355, %vm353
        %vm358 = vmand %vm356, %vm354
        %v359 = vadd.s32 %v345, 256
        %v360 = vadd.s32 %v352, 256
        %v361 = vsel %vm357, %v359, %v345
        %v362 = vsel %vm358, %v360, %v352
        %vm363 = vcmp.lt.s32.totalorder %v337, 0
        %v364 = vsub.s32 0, %v337
        %v365 = vsel %vm363, %v364, %v337
        %v366 = vshrl.u32 %v365, 4
        %v367 = vand.u32 %v365, 15
        %v368 = vsub.s32 0, %v367
        %v369 = vsel %vm363, %v368, %v367
        %vm370 = vcmp.lt.s32.totalorder %v338, 0
        %v371 = vsub.s32 0, %v338
        %v372 = vsel %vm370, %v371, %v338
        %v373 = vshrl.u32 %v372, 4
        %v374 = vand.u32 %v372, 15
        %v375 = vsub.s32 0, %v374
        %v376 = vsel %vm370, %v375, %v374
        %vm377 = vcmp.ne.s32.totalorder %v369, 0
        %vm378 = vcmp.ne.s32.totalorder %v376, 0
        %vm379 = vcmp.lt.s32.totalorder %v369, 0
        %vm380 = vcmp.lt.s32.totalorder %v376, 0
        %vm381 = vmand %vm379, %vm377
        %vm382 = vmand %vm380, %vm378
        %v383 = vadd.s32 %v369, 16
        %v384 = vadd.s32 %v376, 16
        %v385 = vsel %vm381, %v383, %v369
        %v386 = vsel %vm382, %v384, %v376
        %vm387 = vcmp.ge.s32.totalorder %v361, 16
        %vm388 = vcmp.ge.s32.totalorder %v362, 16
        %vm389 = vcmp.lt.s32.totalorder %v361, 240
        %vm390 = vcmp.lt.s32.totalorder %v362, 240
        %vm391 = vcmp.gt.s32.totalorder %v385, 0
        %vm392 = vcmp.gt.s32.totalorder %v386, 0
        %vm393 = vcmp.lt.s32.totalorder %v385, 15
        %vm394 = vcmp.lt.s32.totalorder %v386, 15
        %v395 = vld [vmem:[%s1] sm:$0xf]
        %v396 = vld [vmem:[%s2] sm:$0xff]
        %398 = vset.pattern.permute.xlu0 0
        %399 = vperm.xlu0 %398, %v396
        %v400 = vpop.permute.xlu0 %399
        %v403 = vunpack.c.l.b16 %v335
        %v404 = vunpack.c.h.b16 %v335
        %v405 = vpack.c.b16 %v403, %v403
        %v406 = vpack.c.b16 %v404, %v404
        %vm407 = vcmask 64512
        %v409 = vsel %vm407, %v395, 0
        %vm411 = vcmask 1043456
        %v413 = vsel %vm411, %v405, 0
        %v416 = vsel %vm411, %v406, 0
        %418 = vmatpush.bf16.msra.mxu0 0
        %419 = vmatpush.bf16.msra.mxu0 0
        %420 = vmatpush.bf16.msra.mxu0 0
        %421 = vmatpush.bf16.msra.mxu0 0
        %422 = vmatpush.bf16.msra.mxu0 0
        %423 = vmatpush.bf16.msra.mxu0 0
        %424 = vmatpush.bf16.msra.mxu0 0
        %425 = vmatpush.bf16.msra.mxu0 %v413
        %426 = vmatmul.bf16.gmra.mxu0 %v409
        %v427 = vpop.f32.mrf.mxu0
        %v428 = vadd.f32 %v400, %v427
        %v429 = vpop.f32.mrf.mxu0
        %430 = vdwg.mxu0
        %431 = vmatpush.bf16.msra.mxu0 0
        %432 = vmatpush.bf16.msra.mxu0 0
        %433 = vmatpush.bf16.msra.mxu0 0
        %434 = vmatpush.bf16.msra.mxu0 0
        %435 = vmatpush.bf16.msra.mxu0 0
        %436 = vmatpush.bf16.msra.mxu0 0
        %437 = vmatpush.bf16.msra.mxu0 0
        %438 = vmatpush.bf16.msra.mxu0 %v416
        %439 = vmatmul.bf16.gmra.mxu0 %v409
        %v440 = vpop.f32.mrf.mxu0
        %v441 = vadd.f32 %v400, %v440
        %v442 = vpop.f32.mrf.mxu0
        %443 = vdwg.mxu0
        %v444 = vmax.f32 %v428, 0.0
        %v445 = vmax.f32 %v441, 0.0
        %446 = vrot.lane.b32.xlu0 %v444, 16
        %v447 = vpop.permute.xlu0 %446
        %448 = vrot.lane.b32.xlu0 %v445, 16
        %v449 = vpop.permute.xlu0 %448
        %vm450 = vcmp.lt.s32.totalorder %v337, 16
        %v451 = vsel %vm450, %v447, %v449
        %v452 = vsel %vm450, %v449, %v447
        %v453 = vsel %vm387, 1, 0
        %v454 = vsel %vm388, 1, 0
        %vm455 = vcmp.eq.s32.totalorder %v453, 1
        %vm456 = vcmp.eq.s32.totalorder %v454, 1
        %v457 = vsel %vm455, %v452, 0.0
        %v458 = vsel %vm456, %v451, 0.0
        %459 = vrot.lane.b32.xlu0 %v444, 112
        %v460 = vpop.permute.xlu0 %459
        %461 = vrot.lane.b32.xlu0 %v445, 112
        %v462 = vpop.permute.xlu0 %461
        %vm463 = vcmp.lt.s32.totalorder %v337, 112
        %v464 = vsel %vm463, %v460, %v462
        %v465 = vsel %vm463, %v462, %v460
        %v466 = vsel %vm389, 1, 0
        %v467 = vsel %vm390, 1, 0
        %vm468 = vcmp.eq.s32.totalorder %v466, 1
        %vm469 = vcmp.eq.s32.totalorder %v467, 1
        %v470 = vsel %vm468, %v464, 0.0
        %v471 = vsel %vm469, %v465, 0.0
        %v472 = vpack.c.bf16 %v444, %v457
        %v473 = vpack.c.bf16 %v445, %v458
        %v474 = vpack.c.bf16 %v470, %v470
        %v475 = vpack.c.bf16 %v471, %v471
        %v476 = vld [vmem:[%s3] sm:$0xf]
        %v477 = vld [vmem:[%s4] sm:$0xff]
        %479 = vset.pattern.permute.xlu0 0
        %480 = vperm.xlu0 %479, %v477
        %v481 = vpop.permute.xlu0 %480
        %vm483 = vcmask 195584
        %v485 = vsel %vm483, %v476, 0
        %v488 = vsel %vm411, %v474, 0
        %v491 = vsel %vm411, %v475, 0
        %493 = vmatpush.bf16.msra.mxu0 0
        %494 = vmatpush.bf16.msra.mxu0 0
        %495 = vmatpush.bf16.msra.mxu0 0
        %496 = vmatpush.bf16.msra.mxu0 0
        %497 = vmatpush.bf16.msra.mxu0 0
        %498 = vmatpush.bf16.msra.mxu0 0
        %499 = vmatpush.bf16.msra.mxu0 %v488
        %500 = vmatpush.bf16.msra.mxu0 %v472
        %501 = vmatmul.bf16.gmra.mxu0 %v485
        %v502 = vpop.f32.mrf.mxu0
        %v503 = vadd.f32 %v481, %v502
        %v504 = vpop.f32.mrf.mxu0
        %505 = vdwg.mxu0
        %506 = vmatpush.bf16.msra.mxu0 0
        %507 = vmatpush.bf16.msra.mxu0 0
        %508 = vmatpush.bf16.msra.mxu0 0
        %509 = vmatpush.bf16.msra.mxu0 0
        %510 = vmatpush.bf16.msra.mxu0 0
        %511 = vmatpush.bf16.msra.mxu0 0
        %512 = vmatpush.bf16.msra.mxu0 %v491
        %513 = vmatpush.bf16.msra.mxu0 %v473
        %514 = vmatmul.bf16.gmra.mxu0 %v485
        %v515 = vpop.f32.mrf.mxu0
        %v516 = vadd.f32 %v481, %v515
        %v517 = vpop.f32.mrf.mxu0
        %518 = vdwg.mxu0
        %v519 = vmax.f32 %v503, 0.0
        %v520 = vmax.f32 %v516, 0.0
        %521 = vrot.lane.b32.xlu0 %v519, 1
        %v522 = vpop.permute.xlu0 %521
        %523 = vrot.lane.b32.xlu0 %v520, 1
        %v524 = vpop.permute.xlu0 %523
        %vm525 = vcmp.lt.s32.totalorder %v337, 1
        %v526 = vsel %vm525, %v522, %v524
        %v527 = vsel %vm525, %v524, %v522
        %v528 = vsel %vm391, 1, 0
        %v529 = vsel %vm392, 1, 0
        %vm530 = vcmp.eq.s32.totalorder %v528, 1
        %vm531 = vcmp.eq.s32.totalorder %v529, 1
        %v532 = vsel %vm530, %v527, 0.0
        %v533 = vsel %vm531, %v526, 0.0
        %534 = vrot.lane.b32.xlu0 %v519, 127
        %v535 = vpop.permute.xlu0 %534
        %536 = vrot.lane.b32.xlu0 %v520, 127
        %v537 = vpop.permute.xlu0 %536
        %vm538 = vcmp.lt.s32.totalorder %v337, 127
        %v539 = vsel %vm538, %v535, %v537
        %v540 = vsel %vm538, %v537, %v535
        %v541 = vsel %vm393, 1, 0
        %v542 = vsel %vm394, 1, 0
        %vm543 = vcmp.eq.s32.totalorder %v541, 1
        %vm544 = vcmp.eq.s32.totalorder %v542, 1
        %v545 = vsel %vm543, %v539, 0.0
        %v546 = vsel %vm544, %v540, 0.0
        %v547 = vpack.c.bf16 %v519, %v532
        %v548 = vpack.c.bf16 %v520, %v533
        %v549 = vpack.c.bf16 %v545, %v545
        %v550 = vpack.c.bf16 %v546, %v546
        %v551 = vld [vmem:[%s5] sm:$0xf]
        %v552 = vld [vmem:[%s6] sm:$0xff]
        %554 = vset.pattern.permute.xlu0 0
        %555 = vperm.xlu0 %554, %v552
        %v556 = vpop.permute.xlu0 %555
        %v559 = vsel %vm483, %v551, 0
        %v562 = vsel %vm411, %v549, 0
        %v565 = vsel %vm411, %v550, 0
        %567 = vmatpush.bf16.msra.mxu0 0
        %568 = vmatpush.bf16.msra.mxu0 0
        %569 = vmatpush.bf16.msra.mxu0 0
        %570 = vmatpush.bf16.msra.mxu0 0
        %571 = vmatpush.bf16.msra.mxu0 0
        %572 = vmatpush.bf16.msra.mxu0 0
        %573 = vmatpush.bf16.msra.mxu0 %v562
        %574 = vmatpush.bf16.msra.mxu0 %v547
        %575 = vmatmul.bf16.gmra.mxu0 %v559
        %v576 = vpop.f32.mrf.mxu0
        %v577 = vadd.f32 %v556, %v576
        %v578 = vpop.f32.mrf.mxu0
        %579 = vdwg.mxu0
        %580 = vmatpush.bf16.msra.mxu0 0
        %581 = vmatpush.bf16.msra.mxu0 0
        %582 = vmatpush.bf16.msra.mxu0 0
        %583 = vmatpush.bf16.msra.mxu0 0
        %584 = vmatpush.bf16.msra.mxu0 0
        %585 = vmatpush.bf16.msra.mxu0 0
        %586 = vmatpush.bf16.msra.mxu0 %v565
        %587 = vmatpush.bf16.msra.mxu0 %v548
        %588 = vmatmul.bf16.gmra.mxu0 %v559
        %v589 = vpop.f32.mrf.mxu0
        %v590 = vadd.f32 %v556, %v589
        %v591 = vpop.f32.mrf.mxu0
        %592 = vdwg.mxu0
        %v593 = vmax.f32 %v577, 0.0
        %v594 = vmax.f32 %v590, 0.0
        %v595 = vpack.c.bf16 %v594, %v593
        %v597 = vunpack.c.l.b16 %v595
        %v598 = vunpack.c.h.b16 %v595
        %v599 = vpack.c.b16 %v597, %v597
        %v600 = vpack.c.b16 %v598, %v598
        %v602 = vsel %vm411, %v599, %v405
        %v605 = vsel %vm411, %v600, %v406
        %v607 = vld [vmem:[%s7] sm:$0xf]
        %v608 = vld [vmem:[%s7 + $0x4] sm:$0xf]
        %v609 = vld [vmem:[%s8] sm:$0xff]
        %v610 = vld [vmem:[%s8 + $0x8] sm:$0xff]
        %612 = vset.pattern.permute.xlu0 0
        %613 = vperm.xlu0 %612, %v609
        %v614 = vpop.permute.xlu0 %613
        %617 = vset.pattern.permute.xlu0 0
        %618 = vperm.xlu0 %617, %v610
        %v619 = vpop.permute.xlu0 %618
        %v623 = vunpack.c.l.b16 %v607
        %v624 = vunpack.c.l.b16 %v608
        %v625 = vpack.c.b16 %v624, %v623
        %vm626 = vcmask 130048
        %v628 = vsel %vm626, %v625, 0
        %630 = vmatpush.bf16.msra.mxu0 0
        %631 = vmatpush.bf16.msra.mxu0 0
        %632 = vmatpush.bf16.msra.mxu0 0
        %633 = vmatpush.bf16.msra.mxu0 0
        %634 = vmatpush.bf16.msra.mxu0 0
        %635 = vmatpush.bf16.msra.mxu0 0
        %636 = vmatpush.bf16.msra.mxu0 0
        %637 = vmatpush.bf16.msra.mxu0 %v602
        %638 = vmatmul.bf16.gmra.mxu0 %v628
        %v639 = vpop.f32.mrf.mxu0
        %v640 = vadd.f32 %v614, %v639
        %v641 = vpop.f32.mrf.mxu0
        %v642 = vadd.f32 %v619, %v641
        %643 = vdwg.mxu0
        %644 = vmatpush.bf16.msra.mxu0 0
        %645 = vmatpush.bf16.msra.mxu0 0
        %646 = vmatpush.bf16.msra.mxu0 0
        %647 = vmatpush.bf16.msra.mxu0 0
        %648 = vmatpush.bf16.msra.mxu0 0
        %649 = vmatpush.bf16.msra.mxu0 0
        %650 = vmatpush.bf16.msra.mxu0 0
        %651 = vmatpush.bf16.msra.mxu0 %v605
        %652 = vmatmul.bf16.gmra.mxu0 %v628
        %v653 = vpop.f32.mrf.mxu0
        %v654 = vadd.f32 %v614, %v653
        %v655 = vpop.f32.mrf.mxu0
        %v656 = vadd.f32 %v619, %v655
        %657 = vdwg.mxu0
        %658 = vst [vmem:[%s326] sm:$0xff] %v640
        %659 = vst [vmem:[%s326 + $0x8] sm:$0xff] %v654
        %660 = vst [vmem:[%s326 + $0x10] sm:$0xff] %v642
        %661 = vst [vmem:[%s326 + $0x18] sm:$0xff] %v656
        %s662 = sand.u32 %s225, 1
        %s663 = scalar_lea.sflag [#allocation3], %s662
        %s664 = sand.u32 %s225, 1
        %s665 = smul.addr %s664, 32
        %s666 = scalar_lea.vmem [#allocation2], %s665
        // Predicated region
        $region57: #{tpu_custom_call.1} parent=55 // pred_check
          %p667 = pneg %p235
        $region58: #{tpu_custom_call.1} parent=55 // pred_check_branch
          %669 = sbr.rel (%p667) target = $region60
        $region59: #{tpu_custom_call.1} parent=55 // pred_region
          %s670 = smul.u32 2, %s23
          %672 = vsyncadd %s663, 0
          %s673 = smul.addr %s670, 8
          %s674 = scalar_lea.hbm %s9, %s673
          %s675 = sshll.u32 %s666, 4
          %s676 = int_to_ptr.vmem [resolvable:$true] %s675
          %s677 = sshll.u32 %s674, 4
          %s678 = int_to_ptr.hbm [resolvable:$true] %s677
          %683 = dma.vmem_to_hbm [thread:$0]  %s676, 512, %s678, %s663, 256, 512, 16
        $region60: #{tpu_custom_call.1} parent=55 // pred_fallthru
          _
      $region56: #{tpu_custom_call.1} parent=5 // pred_fallthru
        _
      %p684 = scmp.le.s32.totalorder 2, %s18
      // Predicated region
      $region61: #{tpu_custom_call.1} parent=5 // pred_check
        %p685 = pneg %p684
      $region62: #{tpu_custom_call.1} parent=5 // pred_check_branch
        %687 = sbr.rel (%p685) target = $region64
      $region63: #{tpu_custom_call.1} parent=5 // pred_region
        %s688 = ssub.s32 %s18, 2
        // Predicated region
        $region65: #{tpu_custom_call.1} parent=63 // pred_check
          %p689 = pneg %p241
        $region66: #{tpu_custom_call.1} parent=63 // pred_check_branch
          %691 = sbr.rel (%p689) target = $region68
        $region67: #{tpu_custom_call.1} parent=63 // pred_region
          %s692 = sand.u32 %s226, 1
          %s693 = scalar_lea.sflag [#allocation3], %s692
          %s694 = sand.u32 %s226, 1
          %s695 = smul.addr %s694, 32
          %s696 = scalar_lea.vmem [#allocation2], %s695
          %698 = dma.done %s693, 512
        $region68: #{tpu_custom_call.1} parent=63 // pred_fallthru
          _
      $region64: #{tpu_custom_call.1} parent=5 // pred_fallthru
        _
    $region6: #{tpu_custom_call.1} parent=1 // loop_footer
      %s22 = sadd.s32 1, %s18
    $region7: #{tpu_custom_call.1} parent=1 // loop_footer_branch
      %17 = sbr.rel target = $region3
    $region8: #{tpu_custom_call.1} parent=1 // loop_exit
      _
    %699 = vsyncpa [#allocation3], 1
    %s700 = scalar_lea.sflag [#allocation3], 1
    %701 = vsyncpa %s700, 1

</llo_original>
